<compile_context>
chip_gen: v7x
topology: tpu7x:2x2x1
jax: 0.10.0
libtpu: 0.0.40
codegen_flags: <defaults>
</compile_context>

<pallas_src>
import jax
import jax.numpy as jnp
from jax.experimental import pallas as pl
from jax.experimental.pallas import tpu as pltpu


def _round_up(x, m):
    return ((x + m - 1) // m) * m


def _choose_tm(M, block_m):
    """Pick the M-tile: big tiles are 256-multiples, small-M is split >=2 ways."""
    if block_m >= 256:
        block_m = _round_up(block_m, 256)
    else:
        block_m = max(16, _round_up(block_m, 16))
    if M >= 2 * block_m:
        return block_m
    if M < 32:
        return M  # single full-dim block; too little work to split
    # Split into >= 2 roughly equal 16-aligned blocks so the 1-D "parallel"
    # grid spans both TensorCores on v7x even for small (inference) M.
    return min(_round_up((M + 1) // 2, 16), block_m)


def _patch_embed_kernel(x_ref, w_ref, b_ref, o_ref):
    # x_ref: (tm, Kp) compute_dtype, w_ref: (Kp, E) compute_dtype,
    # b_ref: (1, E) f32, o_ref: (tm, E) out_dtype.  f32 accumulation on MXU.
    acc = jnp.dot(x_ref[...], w_ref[...], preferred_element_type=jnp.float32)
    o_ref[...] = (acc + b_ref[...]).astype(o_ref.dtype)


def patch_embeddings(x_nchw, conv_weight, conv_bias, *, patch_size,
                     block_m=1024, compute_dtype=jnp.bfloat16, out_dtype=None):
    """Equivalent of PatchEmbeddingsLayer.forward.

    Args:
      x_nchw:      (B, C, H, W) input image (NCHW, same as PyTorch).
      conv_weight: (E, C, P, P) Conv2d weight.
      conv_bias:   (E,)         Conv2d bias.
      patch_size:  P (kernel_size == stride, padding == 0).
      block_m:     tile along M = B*N (multiple of 256 recommended).
      compute_dtype: dtype fed to the MXU (bf16 recommended; f32 accumulate).
                   Use jnp.float32 for bit-closer parity with PyTorch Conv2d.
      out_dtype:   output dtype; None -> same as x (PyTorch semantics).
                   Use jnp.bfloat16 when the consumer is bf16 (halves the
                   dominant HBM writeback on v6e/v7x).

    Returns:
      (B, N, E) with N = (H // P) * (W // P).
    """
    B, C, H, W = x_nchw.shape
    E = conv_weight.shape[0]
    P = patch_size
    assert H % P == 0 and W % P == 0, (
        f"H={H}, W={W} must be divisible by patch_size={P}")
    Hp, Wp = H // P, W // P
    N = Hp * Wp
    K = C * P * P
    M = B * N
    out_dtype = jnp.dtype(x_nchw.dtype) if out_dtype is None else jnp.dtype(out_dtype)
    compute_dtype = jnp.dtype(compute_dtype)

    # Reduction-dim padding: prefer 256 (full-depth MXU pass on v6e/v7x) when
    # the extra zero columns are cheap, else 128 (v5e MXU depth / lane pack).
    K128 = _round_up(K, 128)
    K256 = _round_up(K, 256)
    Kp = K256 if (K256 - K) <= max(128, K // 4) else K128

    # --- im2col glue (plain JAX): extract non-overlapping patches in
    # (C, ph, pw) order so the inner K axis matches Conv2d's (C, kh, kw)
    # reduction order.  NOTE: this transpose is materialized in HBM by XLA
    # (one extra bf16 write + read of the activation); see TODO above.
    patches = x_nchw.reshape(B, C, Hp, P, Wp, P)
    patches = patches.transpose(0, 2, 4, 1, 3, 5)            # (B, Hp, Wp, C, P, P)
    patches = patches.reshape(M, K).astype(compute_dtype)    # (M, K)
    if Kp != K:
        patches = jnp.pad(patches, ((0, 0), (0, Kp - K)))

    # Weight / bias prep (tiny; precompute once per model in a real loop).
    w_mat = conv_weight.reshape(E, K).T.astype(compute_dtype)  # (K, E)
    if Kp != K:
        w_mat = jnp.pad(w_mat, ((0, Kp - K), (0, 0)))
    b_mat = conv_bias.reshape(1, E).astype(jnp.float32)         # f32 bias add

    # M tiling.
    tm = _choose_tm(M, block_m)
    grid_m = (M + tm - 1) // tm

    # Explicit VMEM budget (double-buffered x / w / bias / out) + headroom.
    cb = compute_dtype.itemsize
    ob = out_dtype.itemsize
    vmem_bytes = 2 * (tm * Kp * cb + Kp * E * cb + _round_up(E, 128) * 4
                      + tm * E * ob)
    vmem_limit = int(min(vmem_bytes + (8 << 20), 64 << 20))

    cost = pl.CostEstimate(
        flops=2 * M * Kp * E,
        transcendentals=0,
        bytes_accessed=M * Kp * cb + Kp * E * cb + E * 4 + M * E * ob,
    )

    out = pl.pallas_call(
        _patch_embed_kernel,
        out_shape=jax.ShapeDtypeStruct((M, E), out_dtype),
        grid_spec=pltpu.PrefetchScalarGridSpec(
            num_scalar_prefetch=0,
            grid=(grid_m,),
            in_specs=[
                pl.BlockSpec((tm, Kp), lambda i: (i, 0)),   # streamed patches
                pl.BlockSpec((Kp, E), lambda i: (0, 0)),    # resident weight
                pl.BlockSpec((1, E), lambda i: (0, 0)),     # resident bias
            ],
            out_specs=pl.BlockSpec((tm, E), lambda i: (i, 0)),
        ),
        compiler_params=pltpu.CompilerParams(
            # M tiles are independent -> shard across both TCs on v7x.
            dimension_semantics=("parallel",),
            # Best-effort: lets XLA fold the trailing pad/cast into input 0's
            # DMA; it does NOT eliminate the materialized im2col transpose.
            allow_input_fusion=[True, False, False],
            vmem_limit_bytes=vmem_limit,
        ),
        cost_estimate=cost,
    )(patches, w_mat, b_mat)

    return out.reshape(B, N, E)


# jit so the im2col glue + pallas_call compile as one program.
patch_embeddings_jit = jax.jit(
    patch_embeddings,
    static_argnames=("patch_size", "block_m", "compute_dtype", "out_dtype"),
)


if __name__ == "__main__":
    # Small, self-consistent shapes: B=2, C=3, 32x32 image, patch=8 -> N=16,
    # embed_dim=128, K = 3*8*8 = 192 (padded to 256), M = 32 -> tm=16, grid=2.
    B, C, H, W = 2, 3, 32, 32
    P = 8
    E = 128

    key = jax.random.PRNGKey(0)
    kx, kw, kb = jax.random.split(key, 3)

    x = jax.random.normal(kx, (B, C, H, W), dtype=jnp.float32)
    # Synthetic Conv2d params (shapes as in nn.Conv2d(C, E, P, P)).
    conv_weight = jax.random.normal(kw, (E, C, P, P), dtype=jnp.float32) * 0.02
    conv_bias = jax.random.normal(kb, (E,), dtype=jnp.float32) * 0.02

    # Default path: output echoes x.dtype (f32), bf16 MXU compute, f32 accum.
    out = jax.block_until_ready(
        patch_embeddings_jit(x, conv_weight, conv_bias, patch_size=P))

    # Pure-JAX f32 reference (strided conv == patch-flatten matmul).
    Hp, Wp = H // P, W // P
    ref_patches = x.reshape(B, C, Hp, P, Wp, P).transpose(0, 2, 4, 1, 3, 5)
    ref_patches = ref_patches.reshape(B, Hp * Wp, C * P * P)
    ref = jnp.einsum("bnk,ek->bne", ref_patches,
                     conv_weight.reshape(E, C * P * P)) + conv_bias

    assert out.shape == (B, Hp * Wp, E)
    assert out.dtype == x.dtype
    # Tolerance loosened vs f32 reference: MXU operands are bf16 (f32 accum).
    assert jnp.allclose(out, ref, atol=2e-2, rtol=2e-2)

    # Perf-recommended path on v6e/v7x: bf16 output (halves writeback traffic).
    out_bf16 = jax.block_until_ready(
        patch_embeddings_jit(x, conv_weight, conv_bias, patch_size=P,
                             out_dtype=jnp.bfloat16))
    assert out_bf16.dtype == jnp.bfloat16
    assert jnp.allclose(out_bf16.astype(jnp.float32), ref, atol=4e-2, rtol=4e-2)

    print("KERNEL_OK")
</pallas_src>

<mosaic_0001>
module attributes {stable_mosaic.version = 11 : i64} {
  func.func @_patch_embed_kernel(%arg0: i32, %arg1: memref<16x256xbf16, #tpu.memory_space<vmem>>, %arg2: memref<256x128xbf16, #tpu.memory_space<vmem>>, %arg3: memref<1x128xf32, #tpu.memory_space<vmem>>, %arg4: memref<16x128xf32, #tpu.memory_space<vmem>>) attributes {dimension_semantics = [#tpu.dimension_semantics<parallel>], iteration_bounds = array<i64: 2>, scalar_prefetch = 0 : i64, scratch_operands = 0 : i64, tpu.core_type = #tpu.core_type<tc>, window_params = [{transform_indices = @transform_0, window_bounds = array<i64: 16, 256>}, {pipeline_mode = #tpu.pipeline_mode<synchronous>, transform_indices = @transform_1, window_bounds = array<i64: 256, 128>}, {pipeline_mode = #tpu.pipeline_mode<synchronous>, transform_indices = @transform_2, window_bounds = array<i64: 1, 128>}, {transform_indices = @transform_3, window_bounds = array<i64: 16, 128>}]} {
    %c0 = arith.constant 0 : index
    %c0_0 = arith.constant 0 : index
    %0 = vector.load %arg1[%c0, %c0_0] : memref<16x256xbf16, #tpu.memory_space<vmem>>, vector<16x256xbf16>
    %c0_1 = arith.constant 0 : index
    %c0_2 = arith.constant 0 : index
    %1 = vector.load %arg2[%c0_1, %c0_2] : memref<256x128xbf16, #tpu.memory_space<vmem>>, vector<256x128xbf16>
    %cst = arith.constant dense<0.000000e+00> : vector<16x128xf32>
    %2 = tpu.matmul %0, %1, %cst {dimension_numbers = #tpu.dot_dimension_numbers<[1], [0], [0], [1], [0, 0, 1, 1], [], []>} : vector<16x256xbf16>, vector<256x128xbf16>, vector<16x128xf32> -> vector<16x128xf32>
    %c0_3 = arith.constant 0 : index
    %c0_4 = arith.constant 0 : index
    %3 = vector.load %arg3[%c0_3, %c0_4] : memref<1x128xf32, #tpu.memory_space<vmem>>, vector<1x128xf32>
    %4 = vector.broadcast %3 : vector<1x128xf32> to vector<16x128xf32>
    %5 = arith.addf %2, %4 : vector<16x128xf32>
    %c0_5 = arith.constant 0 : index
    %c0_6 = arith.constant 0 : index
    %6 = vector.load %arg4[%c0_5, %c0_6] : memref<16x128xf32, #tpu.memory_space<vmem>>, vector<16x128xf32>
    tpu.vector_store %arg4[%c0_5, %c0_6], %5 {strides = array<i32>} : memref<16x128xf32, #tpu.memory_space<vmem>>, vector<16x128xf32>,
    return
  }
  func.func @transform_0(%arg0: i32) -> (i32, i32) {
    %c0_i32 = arith.constant 0 : i32
    %c0_i32_0 = arith.constant 0 : i32
    return %arg0, %c0_i32 : i32, i32
  }
  func.func @transform_1(%arg0: i32) -> (i32, i32) {
    %c0_i32 = arith.constant 0 : i32
    %c0_i32_0 = arith.constant 0 : i32
    %c0_i32_1 = arith.constant 0 : i32
    return %c0_i32, %c0_i32_0 : i32, i32
  }
  func.func @transform_2(%arg0: i32) -> (i32, i32) {
    %c0_i32 = arith.constant 0 : i32
    %c0_i32_0 = arith.constant 0 : i32
    %c0_i32_1 = arith.constant 0 : i32
    return %c0_i32, %c0_i32_0 : i32, i32
  }
  func.func @transform_3(%arg0: i32) -> (i32, i32) {
    %c0_i32 = arith.constant 0 : i32
    %c0_i32_0 = arith.constant 0 : i32
    return %arg0, %c0_i32 : i32, i32
  }
}

</mosaic_0001>

<llo_original>
// kernel: patch_embeddings.2
$region0: #{patch_embeddings.2}
  #allocation0 [shape = 'u32[]', space=smem, size = 0x4, offset = 0x4, fixed_abs, tag = 'smem constant byte address 0x4 - core index']
  #allocation1 [shape = 'u32[144,128]{1,0:T(1,128)}', space=vmem, size = 0x12000, scoped, tag = 'internal scratch']
  #allocation2 [shape = 'u32[2048]{0}', space=vmem, size = 0x2000, scoped, tag = 'scoped memory for patch_embeddings.2']
  #allocation3 [shape = 'u32[2048]{0}', space=vmem, size = 0x2000, scoped, tag = 'scoped memory for patch_embeddings.2']
  #allocation4 [shape = 'u32[2048]{0}', space=vmem, size = 0x2000, scoped, tag = 'scoped memory for patch_embeddings.2']
  #allocation5 [shape = 'u32[2048]{0}', space=vmem, size = 0x2000, scoped, tag = 'scoped memory for patch_embeddings.2']
  #allocation6 [shape = 'u32[2048]{0}', space=vmem, size = 0x2000, scoped, tag = 'scoped memory for patch_embeddings.2']
  %s0 = inlined_call_operand.vmem [shape: bf16[256,128], index: 0, kind: input, shape index: {}]
  %s1 = inlined_call_operand.vmem [shape: f32[1,128], index: 1, kind: input, shape index: {}]
  %s2 = inlined_call_operand.vmem [shape: bf16[32,192], index: 2, kind: input, shape index: {}]
  %s3 = inlined_call_operand.<no memory space> [shape: bf16[], index: 3, kind: input, shape index: {}]
  %s4 = inlined_call_operand.hbm [shape: f32[32,128], index: 4, kind: output, shape index: {}]
  %s5 = sld [smem:[#allocation0]]
  $region45: #{patch_embeddings.2} parent=0
    _
  %s7 = ssub.s32 1, %s5
  %s8 = scalar_select 0, %s7, %s5
  %v9 = vstv %s3
  %v10 = vunpack.i.l.bf16 %v9
  %v12 = vunpack.i.h.bf16 %v9
  $region1: #{patch_embeddings.2} parent=0
    #allocation7 [shape = 'u8[16384]{0}', space=vmem, size = 0x4000, scoped, tag = 'output window, operand 0']
    #allocation8 [shape = 's32[2]{0}', space=sflag, size = 0x8, scoped, tag = 'scoped memory for patch_embeddings.2']
    %14 = vsyncpa [#allocation8], 0
    %s15 = scalar_lea.sflag [#allocation8], 1
    %16 = vsyncpa %s15, 0
    loop: start=0, step=1, limit=4
    $region2: #{patch_embeddings.2} parent=1 // loop_pre_header
      _
    $region3: #{patch_embeddings.2} parent=1 // loop_header
      %s18 = sphi 0, %s22
      %p19 = scmp.ge.s32.totalorder %s18, 4
      %s28 = sphi 0, %s30
      %s31 = sphi 0, %s28
      %s32 = sphi 0, %s31
      %s48 = sphi 0, %s32
      %s52 = sphi 0, %s52
      %s54 = sphi 0, %s52
      %s55 = sphi 0, %s54
      %s69 = sphi 0, %s55
      %s73 = sphi 0, %s73
      %s75 = sphi 0, %s73
      %s76 = sphi 0, %s75
      %s90 = sphi 0, %s76
      %s96 = sphi 0, %s98
      %s99 = sphi 0, %s96
      %s100 = sphi 0, %s99
      %s116 = sphi 0, %s100
    $region4: #{patch_embeddings.2} parent=1 // loop_header_branch
      %21 = sbr.rel (%p19) target = $region8
    $region5: #{patch_embeddings.2} parent=1 // loop_body
      %s23 = ssub.s32 %s18, 1
      %s24 = ssub.s32 %s18, 2
      %s25 = sadd.s32 %s18, 1
      %s26 = ssub.s32 %s18, %s25
      %p27 = scmp.eq.s32.totalorder %s26, 0
      %s29 = sadd.s32 %s28, 1
      %s30 = scalar_select %p27, %s28, %s29
      %p33 = pneg %p27
      %p34 = scmp.eq.s32.totalorder %s18, 1
      %p35 = por %p33, %p34
      %p36 = scmp.ne.s32.totalorder %s28, %s31
      %p37 = scmp.eq.s32.totalorder %s18, 0
      %p38 = por %p36, %p37
      %p39 = scmp.ne.s32.totalorder %s28, %s31
      %p40 = scmp.eq.s32.totalorder %s23, 1
      %p41 = por %p39, %p40
      %p42 = scmp.ne.s32.totalorder %s31, %s32
      %p43 = scmp.eq.s32.totalorder %s23, 0
      %p44 = por %p42, %p43
      %p45 = scmp.ne.s32.totalorder %s31, %s32
      %p46 = scmp.eq.s32.totalorder %s24, 1
      %p47 = por %p45, %p46
      %p49 = scmp.ne.s32.totalorder %s32, %s48
      %p50 = scmp.eq.s32.totalorder %s24, 0
      %p51 = por %p49, %p50
      %s53 = sadd.s32 %s52, 1
      %p56 = scmp.eq.s32.totalorder %s18, 1
      %p57 = scmp.ne.s32.totalorder %s52, %s54
      %p58 = scmp.eq.s32.totalorder %s18, 0
      %p59 = por %p57, %p58
      %p60 = scmp.ne.s32.totalorder %s52, %s54
      %p61 = scmp.eq.s32.totalorder %s23, 1
      %p62 = por %p60, %p61
      %p63 = scmp.ne.s32.totalorder %s54, %s55
      %p64 = scmp.eq.s32.totalorder %s23, 0
      %p65 = por %p63, %p64
      %p66 = scmp.ne.s32.totalorder %s54, %s55
      %p67 = scmp.eq.s32.totalorder %s24, 1
      %p68 = por %p66, %p67
      %p70 = scmp.ne.s32.totalorder %s55, %s69
      %p71 = scmp.eq.s32.totalorder %s24, 0
      %p72 = por %p70, %p71
      %s74 = sadd.s32 %s73, 1
      %p77 = scmp.eq.s32.totalorder %s18, 1
      %p78 = scmp.ne.s32.totalorder %s73, %s75
      %p79 = scmp.eq.s32.totalorder %s18, 0
      %p80 = por %p78, %p79
      %p81 = scmp.ne.s32.totalorder %s73, %s75
      %p82 = scmp.eq.s32.totalorder %s23, 1
      %p83 = por %p81, %p82
      %p84 = scmp.ne.s32.totalorder %s75, %s76
      %p85 = scmp.eq.s32.totalorder %s23, 0
      %p86 = por %p84, %p85
      %p87 = scmp.ne.s32.totalorder %s75, %s76
      %p88 = scmp.eq.s32.totalorder %s24, 1
      %p89 = por %p87, %p88
      %p91 = scmp.ne.s32.totalorder %s76, %s90
      %p92 = scmp.eq.s32.totalorder %s24, 0
      %p93 = por %p91, %p92
      %s94 = ssub.s32 %s18, %s25
      %p95 = scmp.eq.s32.totalorder %s94, 0
      %s97 = sadd.s32 %s96, 1
      %s98 = scalar_select %p95, %s96, %s97
      %p101 = pneg %p95
      %p102 = scmp.eq.s32.totalorder %s18, 1
      %p103 = por %p101, %p102
      %p104 = scmp.ne.s32.totalorder %s96, %s99
      %p105 = scmp.eq.s32.totalorder %s18, 0
      %p106 = por %p104, %p105
      %p107 = scmp.ne.s32.totalorder %s96, %s99
      %p108 = scmp.eq.s32.totalorder %s23, 1
      %p109 = por %p107, %p108
      %p110 = scmp.ne.s32.totalorder %s99, %s100
      %p111 = scmp.eq.s32.totalorder %s23, 0
      %p112 = por %p110, %p111
      %p113 = scmp.ne.s32.totalorder %s99, %s100
      %p114 = scmp.eq.s32.totalorder %s24, 1
      %p115 = por %p113, %p114
      %p117 = scmp.ne.s32.totalorder %s100, %s116
      %p118 = scmp.eq.s32.totalorder %s24, 0
      %p119 = por %p117, %p118
      %p120 = scmp.le.s32.totalorder 1, %s18
      %p121 = scmp.lt.s32.totalorder %s18, 3
      %p122 = pnand %p120, %p121
      %p123 = pneg %p122
      // Predicated region
      $region9: #{patch_embeddings.2} parent=5 // pred_check
        _
      $region10: #{patch_embeddings.2} parent=5 // pred_check_branch
        %125 = sbr.rel (%p122) target = $region12
      $region11: #{patch_embeddings.2} parent=5 // pred_region
        %s126 = ssub.s32 %s18, 1
        // Predicated region
        $region13: #{patch_embeddings.2} parent=11 // pred_check
          %p127 = pneg %p65
        $region14: #{patch_embeddings.2} parent=11 // pred_check_branch
          %129 = sbr.rel (%p127) target = $region16
        $region15: #{patch_embeddings.2} parent=11 // pred_region
          _
        $region16: #{patch_embeddings.2} parent=11 // pred_fallthru
          _
        // Predicated region
        $region17: #{patch_embeddings.2} parent=11 // pred_check
          %p130 = pneg %p86
        $region18: #{patch_embeddings.2} parent=11 // pred_check_branch
          %132 = sbr.rel (%p130) target = $region20
        $region19: #{patch_embeddings.2} parent=11 // pred_region
          _
        $region20: #{patch_embeddings.2} parent=11 // pred_fallthru
          _
      $region12: #{patch_embeddings.2} parent=5 // pred_fallthru
        _
      %p133 = scmp.lt.s32.totalorder %s18, 2
      // Predicated region
      $region21: #{patch_embeddings.2} parent=5 // pred_check
        %p134 = pneg %p133
      $region22: #{patch_embeddings.2} parent=5 // pred_check_branch
        %136 = sbr.rel (%p134) target = $region24
      $region23: #{patch_embeddings.2} parent=5 // pred_region
        // Predicated region
        $region25: #{patch_embeddings.2} parent=23 // pred_check
          %p137 = pneg %p38
        $region26: #{patch_embeddings.2} parent=23 // pred_check_branch
          %139 = sbr.rel (%p137) target = $region28
        $region27: #{patch_embeddings.2} parent=23 // pred_region
          %s140 = smul.u32 2, %s18
          %p141 = scmp.lt.s32.totalorder %s140, 3
          %s142 = scalar_select %p141, %s140, 3
          %s143 = smul.addr %s142, 2
          %s144 = smul.addr %s143, 4
          %s145 = scalar_lea.vmem %s2, %s144
          %s146 = smul.u32 2, %s18
        $region28: #{patch_embeddings.2} parent=23 // pred_fallthru
          _
      $region24: #{patch_embeddings.2} parent=5 // pred_fallthru
        _
      %p147 = scmp.le.s32.totalorder 1, %s18
      %p148 = scmp.lt.s32.totalorder %s18, 3
      %p149 = pnand %p147, %p148
      %p150 = pneg %p149
      // Predicated region
      $region29: #{patch_embeddings.2} parent=5 // pred_check
        _
      $region30: #{patch_embeddings.2} parent=5 // pred_check_branch
        %152 = sbr.rel (%p149) target = $region32
      $region31: #{patch_embeddings.2} parent=5 // pred_region
        #allocation9 [shape = 'u8[8192]{0}', space=vmem, size = 0x2000, dematerialized = true, scoped, tag = 'FusionAdapter Buffer %fusion.1 = bf16[32,256]{1,0:T(8,128)(2,1)} fusion(%param_2.1, %param_3), kind=kLoop, calls=%fused_computation.2.clone, metadata={op_name="jit(patch_embeddings)/jit(_pad)/pad" stack_frame_id=10}']
        %s153 = ssub.s32 %s18, 1
        %s154 = smul.u32 2, %s23
        %p155 = scmp.lt.s32.totalorder %s154, 3
        %s156 = scalar_select %p155, %s154, 3
        %s157 = smul.addr %s156, 2
        %s158 = smul.addr %s157, 4
        %s159 = scalar_lea.vmem %s2, %s158
        %p160 = pneg %p44
        %p161 = pneg %p41
        %p162 = pneg %p65
        %p163 = pneg %p62
        %p164 = pneg %p86
        %p165 = pneg %p83
        %p166 = pneg %p112
        %p167 = pneg %p109
        %s168 = sand.u32 %s99, 1
        %s169 = scalar_lea.sflag [#allocation8], %s168
        %s170 = sand.u32 %s99, 1
        %s171 = smul.addr %s170, 16
        %s172 = scalar_lea.vmem [#allocation7], %s171
        %s173 = smul.u32 2, %s23
        %p174 = scmp.lt.s32.totalorder %s173, 3
        %s175 = scalar_select %p174, %s173, 3
        %s176 = smul.addr %s175, 2
        %s177 = smul.addr %s176, 4
        %s178 = scalar_lea.vmem %s2, %s177
        %s179 = smul.u32 2, %s23
        %s180 = smul.u32 2, %s23
        %v181 = vld [vmem:[%s178] sm:$0xf]
        %v182 = vunpack.c.l.bf16 %v181
        %v183 = vunpack.c.h.bf16 %v181
        %v184 = vlaneseq
        %v185 = vand.u32 %v184, 127
        %vm187 = vcmp.lt.s32.totalorder %v185, 192
        %v188 = vsel %vm187, %v182, %v10
        %v189 = vpack.c.bf16 0.0, %v188
        %191 = vst [vmem:[#allocation9] sm:$0xf] %v189
        %s192 = scalar_lea.vmem %s178, 4
        %s194 = sor.u32 255, 127
        %s195 = sand.u32 %s194, 85
        %s196 = sshrl.u32 %s195, 1
        %s197 = sor.u32 %s195, %s196
        %s198 = sand.u32 51, %s197
        %s199 = sshrl.u32 %s198, 2
        %s200 = sor.u32 %s198, %s199
        %s201 = sand.u32 15, %s200
        %v202 = vld [vmem:[%s192] sm:%s201]
        %v203 = vunpack.c.l.bf16 %v202
        %v204 = vunpack.c.h.bf16 %v202
        %v205 = vlaneseq
        %v206 = vand.u32 %v205, 127
        %v207 = vadd.s32 %v206, 128
        %vm208 = vcmp.lt.s32.totalorder %v207, 192
        %v209 = vsel %vm208, %v203, %v10
        %s210 = scalar_lea.vmem [#allocation9], 4
        %v211 = vpack.c.bf16 0.0, %v209
        %213 = vst [vmem:[%s210] sm:$0xf] %v211
        %s214 = scalar_lea.vmem %s178, 8
        %v215 = vld [vmem:[%s214] sm:$0xf]
        %v216 = vunpack.c.l.bf16 %v215
        %v217 = vunpack.c.h.bf16 %v215
        %v218 = vlaneseq
        %v219 = vand.u32 %v218, 127
        %vm221 = vcmp.lt.s32.totalorder %v219, 192
        %v222 = vsel %vm221, %v216, %v10
        %s223 = scalar_lea.vmem [#allocation9], 8
        %v224 = vpack.c.bf16 0.0, %v222
        %226 = vst [vmem:[%s223] sm:$0xf] %v224
        %s227 = scalar_lea.vmem %s178, 12
        %s229 = sor.u32 255, 127
        %s230 = sand.u32 %s229, 85
        %s231 = sshrl.u32 %s230, 1
        %s232 = sor.u32 %s230, %s231
        %s233 = sand.u32 51, %s232
        %s234 = sshrl.u32 %s233, 2
        %s235 = sor.u32 %s233, %s234
        %s236 = sand.u32 15, %s235
        %v237 = vld [vmem:[%s227] sm:%s236]
        %v238 = vunpack.c.l.bf16 %v237
        %v239 = vunpack.c.h.bf16 %v237
        %v240 = vlaneseq
        %v241 = vand.u32 %v240, 127
        %v242 = vadd.s32 %v241, 128
        %vm243 = vcmp.lt.s32.totalorder %v242, 192
        %v244 = vsel %vm243, %v238, %v10
        %s245 = scalar_lea.vmem [#allocation9], 12
        %v246 = vpack.c.bf16 0.0, %v244
        %248 = vst [vmem:[%s245] sm:$0xf] %v246
        %v250 = vld [vmem:[#allocation9] sm:$0xff]
        %v251 = vld [vmem:[#allocation9 + $0x8] sm:$0xff]
        %v252 = vld [vmem:[%s0] sm:$0xf]
        %v253 = vld [vmem:[%s0 + $0x4] sm:$0xf]
        %v254 = vld [vmem:[%s0 + $0x8] sm:$0xf]
        %v255 = vld [vmem:[%s0 + $0xc] sm:$0xf]
        %v256 = vld [vmem:[%s0 + $0x10] sm:$0xf]
        %v257 = vld [vmem:[%s0 + $0x14] sm:$0xf]
        %v258 = vld [vmem:[%s0 + $0x18] sm:$0xf]
        %v259 = vld [vmem:[%s0 + $0x1c] sm:$0xf]
        %v260 = vld [vmem:[%s0 + $0x20] sm:$0xf]
        %v261 = vld [vmem:[%s0 + $0x24] sm:$0xf]
        %v262 = vld [vmem:[%s0 + $0x28] sm:$0xf]
        %v263 = vld [vmem:[%s0 + $0x2c] sm:$0xf]
        %v264 = vld [vmem:[%s0 + $0x30] sm:$0xf]
        %v265 = vld [vmem:[%s0 + $0x34] sm:$0xf]
        %v266 = vld [vmem:[%s0 + $0x38] sm:$0xf]
        %v267 = vld [vmem:[%s0 + $0x3c] sm:$0xf]
        %v268 = vld [vmem:[%s0 + $0x40] sm:$0xf]
        %v269 = vld [vmem:[%s0 + $0x44] sm:$0xf]
        %v270 = vld [vmem:[%s0 + $0x48] sm:$0xf]
        %v271 = vld [vmem:[%s0 + $0x4c] sm:$0xf]
        %v272 = vld [vmem:[%s0 + $0x50] sm:$0xf]
        %v273 = vld [vmem:[%s0 + $0x54] sm:$0xf]
        %v274 = vld [vmem:[%s0 + $0x58] sm:$0xf]
        %v275 = vld [vmem:[%s0 + $0x5c] sm:$0xf]
        %v276 = vld [vmem:[%s0 + $0x60] sm:$0xf]
        %v277 = vld [vmem:[%s0 + $0x64] sm:$0xf]
        %v278 = vld [vmem:[%s0 + $0x68] sm:$0xf]
        %v279 = vld [vmem:[%s0 + $0x6c] sm:$0xf]
        %v280 = vld [vmem:[%s0 + $0x70] sm:$0xf]
        %v281 = vld [vmem:[%s0 + $0x74] sm:$0xf]
        %v282 = vld [vmem:[%s0 + $0x78] sm:$0xf]
        %v283 = vld [vmem:[%s0 + $0x7c] sm:$0xf]
        %v284 = vld [vmem:[%s1] sm:$0x1]
        %v286 = vlaneseq
        %v287 = vshrl.u32 %v286, 7
        %v288 = vsub.s32 0, %v287
        %v289 = vrot.slane %v284, %v288
        %v293 = vunpack.c.l.b16 %v250
        %v294 = vunpack.c.h.b16 %v250
        %v295 = vunpack.c.l.b16 %v251
        %v296 = vunpack.c.h.b16 %v251
        %v297 = vpack.c.b16 %v295, %v293
        %v298 = vpack.c.b16 %v296, %v294
        %v333 = vunpack.c.l.b16 %v252
        %v334 = vunpack.c.l.b16 %v253
        %v335 = vunpack.c.l.b16 %v254
        %v336 = vunpack.c.l.b16 %v255
        %v337 = vunpack.c.l.b16 %v256
        %v338 = vunpack.c.l.b16 %v257
        %v339 = vunpack.c.l.b16 %v258
        %v340 = vunpack.c.l.b16 %v259
        %v341 = vunpack.c.l.b16 %v260
        %v342 = vunpack.c.l.b16 %v261
        %v343 = vunpack.c.l.b16 %v262
        %v344 = vunpack.c.l.b16 %v263
        %v345 = vunpack.c.l.b16 %v264
        %v346 = vunpack.c.l.b16 %v265
        %v347 = vunpack.c.l.b16 %v266
        %v348 = vunpack.c.l.b16 %v267
        %v349 = vunpack.c.l.b16 %v268
        %v350 = vunpack.c.l.b16 %v269
        %v351 = vunpack.c.l.b16 %v270
        %v352 = vunpack.c.l.b16 %v271
        %v353 = vunpack.c.l.b16 %v272
        %v354 = vunpack.c.l.b16 %v273
        %v355 = vunpack.c.l.b16 %v274
        %v356 = vunpack.c.l.b16 %v275
        %v357 = vunpack.c.l.b16 %v276
        %v358 = vunpack.c.l.b16 %v277
        %v359 = vunpack.c.l.b16 %v278
        %v360 = vunpack.c.l.b16 %v279
        %v361 = vunpack.c.l.b16 %v280
        %v362 = vunpack.c.l.b16 %v281
        %v363 = vunpack.c.l.b16 %v282
        %v364 = vunpack.c.l.b16 %v283
        %v365 = vpack.c.b16 %v334, %v333
        %v366 = vpack.c.b16 %v336, %v335
        %v367 = vpack.c.b16 %v338, %v337
        %v368 = vpack.c.b16 %v340, %v339
        %v369 = vpack.c.b16 %v342, %v341
        %v370 = vpack.c.b16 %v344, %v343
        %v371 = vpack.c.b16 %v346, %v345
        %v372 = vpack.c.b16 %v348, %v347
        %v373 = vpack.c.b16 %v350, %v349
        %v374 = vpack.c.b16 %v352, %v351
        %v375 = vpack.c.b16 %v354, %v353
        %v376 = vpack.c.b16 %v356, %v355
        %v377 = vpack.c.b16 %v358, %v357
        %v378 = vpack.c.b16 %v360, %v359
        %v379 = vpack.c.b16 %v362, %v361
        %v380 = vpack.c.b16 %v364, %v363
        %397 = vmatprep.subr.bf16.mxu0 0
        %398 = vmatpush1.bf16.msra.mxu0 %v365
        %399 = vmatprep.subr.bf16.mxu0 0
        %400 = vmatpush1.bf16.msra.mxu0 %v366
        %401 = vmatprep.subr.bf16.mxu0 0
        %402 = vmatpush1.bf16.msra.mxu0 %v367
        %403 = vmatprep.subr.bf16.mxu0 0
        %404 = vmatpush1.bf16.msra.mxu0 %v368
        %405 = vmatprep.subr.bf16.mxu0 0
        %406 = vmatpush1.bf16.msra.mxu0 %v369
        %407 = vmatprep.subr.bf16.mxu0 0
        %408 = vmatpush1.bf16.msra.mxu0 %v370
        %409 = vmatprep.subr.bf16.mxu0 0
        %410 = vmatpush1.bf16.msra.mxu0 %v371
        %411 = vmatprep.subr.bf16.mxu0 0
        %412 = vmatpush1.bf16.msra.mxu0 %v372
        %413 = vmatprep.subr.bf16.mxu0 0
        %414 = vmatpush1.bf16.msra.mxu0 %v373
        %415 = vmatprep.subr.bf16.mxu0 0
        %416 = vmatpush1.bf16.msra.mxu0 %v374
        %417 = vmatprep.subr.bf16.mxu0 0
        %418 = vmatpush1.bf16.msra.mxu0 %v375
        %419 = vmatprep.subr.bf16.mxu0 0
        %420 = vmatpush1.bf16.msra.mxu0 %v376
        %421 = vmatprep.subr.bf16.mxu0 0
        %422 = vmatpush1.bf16.msra.mxu0 %v377
        %423 = vmatprep.subr.bf16.mxu0 0
        %424 = vmatpush1.bf16.msra.mxu0 %v378
        %425 = vmatprep.subr.bf16.mxu0 0
        %426 = vmatpush1.bf16.msra.mxu0 %v379
        %427 = vmatprep.subr.bf16.mxu0 0
        %428 = vmatpush1.bf16.msra.mxu0 %v380
        %429 = vmatprep.mubr.bf16.mxu0 %v298
        %430 = vmatmul.mubr.bf16.gmra.mrb[0].mxu0 %v297
        %v431 = vpop.f32.mrb[0].mxu0
        %v432 = vadd.f32 %v289, %v431
        %v433 = vpop.f32.mrb[0].mxu0
        %v434 = vpop.f32.mrb[0].mxu0
        %v435 = vadd.f32 %v289, %v434
        %v436 = vpop.f32.mrb[0].mxu0
        %437 = vdwg.mxu0
        %438 = vst [vmem:[%s172] sm:$0xff] %v432
        %439 = vst [vmem:[%s172 + $0x8] sm:$0xff] %v435
        %s440 = sand.u32 %s99, 1
        %s441 = scalar_lea.sflag [#allocation8], %s440
        %s442 = sand.u32 %s99, 1
        %s443 = smul.addr %s442, 16
        %s444 = scalar_lea.vmem [#allocation7], %s443
        // Predicated region
        $region33: #{patch_embeddings.2} parent=31 // pred_check
          %p445 = pneg %p109
        $region34: #{patch_embeddings.2} parent=31 // pred_check_branch
          %447 = sbr.rel (%p445) target = $region36
        $region35: #{patch_embeddings.2} parent=31 // pred_region
          %s448 = smul.u32 2, %s23
          %s450 = ssub.s32 256, 256
          %451 = vsyncadd %s441, %s450
          %s452 = smul.addr %s448, 128
          %s453 = scalar_lea.hbm %s4, %s452
          %s454 = sshll.u32 %s444, 4
          %s455 = int_to_ptr.vmem [resolvable:$true] %s454
          %460 = dma.vmem_to_hbm [thread:$0]  %s455, 256, %s453, %s441, 128, 128, 8
        $region36: #{patch_embeddings.2} parent=31 // pred_fallthru
          _
      $region32: #{patch_embeddings.2} parent=5 // pred_fallthru
        _
      %p461 = scmp.le.s32.totalorder 2, %s18
      // Predicated region
      $region37: #{patch_embeddings.2} parent=5 // pred_check
        %p462 = pneg %p461
      $region38: #{patch_embeddings.2} parent=5 // pred_check_branch
        %464 = sbr.rel (%p462) target = $region40
      $region39: #{patch_embeddings.2} parent=5 // pred_region
        %s465 = ssub.s32 %s18, 2
        // Predicated region
        $region41: #{patch_embeddings.2} parent=39 // pred_check
          %p466 = pneg %p115
        $region42: #{patch_embeddings.2} parent=39 // pred_check_branch
          %468 = sbr.rel (%p466) target = $region44
        $region43: #{patch_embeddings.2} parent=39 // pred_region
          %s469 = sand.u32 %s100, 1
          %s470 = scalar_lea.sflag [#allocation8], %s469
          %s471 = sand.u32 %s100, 1
          %s472 = smul.addr %s471, 16
          %s473 = scalar_lea.vmem [#allocation7], %s472
          %474 = dma.done %s470, 256
        $region44: #{patch_embeddings.2} parent=39 // pred_fallthru
          _
      $region40: #{patch_embeddings.2} parent=5 // pred_fallthru
        _
    $region6: #{patch_embeddings.2} parent=1 // loop_footer
      %s22 = sadd.s32 1, %s18
    $region7: #{patch_embeddings.2} parent=1 // loop_footer_branch
      %17 = sbr.rel target = $region3
    $region8: #{patch_embeddings.2} parent=1 // loop_exit
      _
    %475 = vsyncpa [#allocation8], 1
    %s476 = scalar_lea.sflag [#allocation8], 1
    %477 = vsyncpa %s476, 1

</llo_original>
